<compile_context>
chip_gen: v6e
topology: v6e:2x2x1
jax: 0.10.0
libtpu: 0.0.40
codegen_flags: <defaults>
</compile_context>

<pallas_src>
from enum import Enum
from functools import partial

import numpy as np
import jax
import jax.numpy as jnp
from jax import lax
from jax.experimental import pallas as pl
from jax.experimental.pallas import tpu as pltpu


# ----------------------------------------------------------------------------
# Heuristic (ported 1:1 from the PyTorch module)
# ----------------------------------------------------------------------------
class ModelSize(str, Enum):
    S = "S"
    M = "M"
    L = "L"
    C = "C"


def _embedding_heuristic(
    id: str,
    model_size,
    dim_input: int,
    embedding_scale_factor: float = 2.8,
    embedding_exponent: float = 0.23,
    embedding_lower_bound: int = 12,
    exp_embedding_scale_factor: float = 0.25,
) -> int:
    if isinstance(model_size, dict):
        return model_size[id]
    model_size_output_dim = dict(
        S=max(embedding_lower_bound, int(2 * np.ceil(dim_input**0.15))),
        M=max(embedding_lower_bound, int(3 * np.ceil(dim_input**exp_embedding_scale_factor))),
        L=max(embedding_lower_bound, int(4 * np.ceil(dim_input**0.33))),
        C=max(embedding_lower_bound, int(embedding_scale_factor * np.ceil(dim_input**embedding_exponent))),
    )
    return min(dim_input, model_size_output_dim[model_size])


def _round_up(x: int, m: int) -> int:
    return ((x + m - 1) // m) * m


# ----------------------------------------------------------------------------
# Fused Pallas kernel: one-hot MXU matmul (gather + cross-column sum in one op)
# ----------------------------------------------------------------------------
def _fused_onehot_kernel(idx_ref, tab_ref, out_ref, *, n_cols, v_tot_p):
    # idx_ref: VMEM (tile_n, C) int32 -- already clipped + offset into fused rows
    # tab_ref: VMEM (V_tot_p, D_tot_p) f32 fused table (resident across grid)
    # out_ref: VMEM (tile_n, D_tot_p) f32 output tile (lane-dense, full tiles)
    tile_n = out_ref.shape[0]
    idx = idx_ref[...]                                             # (tile_n, C)
    iota = lax.broadcasted_iota(jnp.int32, (tile_n, v_tot_p), 1)   # (tile_n, V)

    # Sum of C disjoint one-hots: row n has a single 1 in each column's
    # (disjoint, zero-padded) row range of the fused table.
    one_hot = (iota == idx[:, 0:1]).astype(tab_ref.dtype)
    for c in range(1, n_cols):
        one_hot = one_hot + (iota == idx[:, c:c + 1]).astype(tab_ref.dtype)

    out_ref[...] = jnp.dot(
        one_hot, tab_ref[...], preferred_element_type=jnp.float32
    ).astype(out_ref.dtype)


def _make_fused_forward(cards, dims, row_offsets, col_offsets, v_tot_p, d_tot_p):
    n_cols = len(cards)

    def fwd(fused_table, *xs):
        n = int(np.prod(xs[0].shape)) if xs[0].ndim > 0 else 1

        # Tile size: large tiles amortize the ~0.35us per-grid-step overhead;
        # small inputs just use a single minimal tile.
        if n >= 512:
            tile_n = 512
        elif n >= 128:
            tile_n = 128
        else:
            tile_n = _round_up(max(n, 1), 8)
        n_pad = _round_up(max(n, 1), tile_n)

        # Build (N_pad, C) int32 index array: clip to vocab (guards against
        # out-of-range / padded indices -- nn.Embedding would error instead)
        # and pre-add the fused-table row offset.  Padded rows gather fused
        # row 0 and are sliced off below.
        idx_cols = []
        for c, x in enumerate(xs):
            flat = jnp.clip(x.reshape(-1).astype(jnp.int32), 0, cards[c] - 1)
            flat = flat + np.int32(row_offsets[c])
            idx_cols.append(jnp.pad(flat, (0, n_pad - n)))
        idx_nc = jnp.stack(idx_cols, axis=1)                       # (N_pad, C)

        grid_steps = n_pad // tile_n
        # Tiny grids: duplicated resident-table DMA per TC outweighs megacore
        # sharding; large grids: shard across TCs.
        semantics = ("arbitrary",) if grid_steps <= 2 else ("parallel",)

        # Explicit VMEM budget (table may be double-buffered by the pipeliner,
        # plus double-buffered idx/out tiles and the one-hot intermediate).
        est = (
            2 * v_tot_p * d_tot_p * 4
            + 2 * tile_n * d_tot_p * 4
            + 2 * tile_n * n_cols * 4
            + 2 * tile_n * v_tot_p * 4
            + (1 << 20)
        )
        vmem_limit = int(min(64 << 20, max(32 << 20, 2 * est)))

        kernel = partial(_fused_onehot_kernel, n_cols=n_cols, v_tot_p=v_tot_p)
        slab = pl.pallas_call(
            kernel,
            out_shape=jax.ShapeDtypeStruct((n_pad, d_tot_p), fused_table.dtype),
            grid_spec=pltpu.PrefetchScalarGridSpec(
                num_scalar_prefetch=0,
                grid=(grid_steps,),
                in_specs=[
                    # Per-tile index block (last dim == full array dim, OK).
                    pl.BlockSpec((tile_n, n_cols), lambda i: (i, 0)),
                    # Fused table stays resident across the whole grid.
                    pl.BlockSpec((v_tot_p, d_tot_p), lambda i: (0, 0)),
                ],
                out_specs=pl.BlockSpec((tile_n, d_tot_p), lambda i: (i, 0)),
            ),
            compiler_params=pltpu.CompilerParams(
                dimension_semantics=semantics,
                vmem_limit_bytes=vmem_limit,
            ),
            cost_estimate=pl.CostEstimate(
                flops=2 * n_pad * v_tot_p * d_tot_p,
                transcendentals=0,
                bytes_accessed=(
                    fused_table.size * 4 + idx_nc.size * 4 + n_pad * d_tot_p * 4
                ),
            ),
        )(idx_nc, fused_table)

        # Per-column slices out of the lane-dense slab, reshaped back and
        # squeezed exactly like torch.squeeze(emb, -2).
        outs = []
        for c, x in enumerate(xs):
            d = dims[c]
            emb = slab[:n, col_offsets[c]:col_offsets[c] + d]
            emb = emb.reshape(x.shape + (d,))
            if emb.ndim >= 2 and emb.shape[-2] == 1:
                emb = jnp.squeeze(emb, axis=-2)
            outs.append(emb)
        return tuple(outs)

    return jax.jit(fwd)


# ----------------------------------------------------------------------------
# JAX/Pallas Embedders
# ----------------------------------------------------------------------------
class Embedders:
    def __init__(
        self,
        model_size,
        cardinalities: dict,
        embedding_lower_bound: int = 10,
        embedding_scale_factor: float = 2.8,
        embedding_exponent: float = 0.23,
        exp_embedding_scale_factor: float = 0.25,
        seed: int = 0,
    ):
        self.model_size = model_size
        self.cardinalities = dict(cardinalities)
        self.dims = []
        self.tables = {}

        row_offsets, col_offsets, sub_tables = [], [], []
        row, col = 0, 0
        key = jax.random.PRNGKey(seed)
        for sub_col, dim_input in self.cardinalities.items():
            dim_output = _embedding_heuristic(
                id=self.id(sub_col),
                model_size=model_size,
                dim_input=dim_input,
                embedding_lower_bound=embedding_lower_bound,
                embedding_scale_factor=embedding_scale_factor,
                embedding_exponent=embedding_exponent,
                exp_embedding_scale_factor=exp_embedding_scale_factor,
            )
            key, sub = jax.random.split(key)
            # nn.Embedding default init ~ N(0, 1); deterministic synthetic weights
            tab = jax.random.normal(sub, (dim_input, dim_output), dtype=jnp.float32)
            self.tables[self.id(sub_col)] = tab
            sub_tables.append(tab)
            row_offsets.append(row)
            col_offsets.append(col)
            row += dim_input
            col += dim_output
            self.dims.append(dim_output)

        self.row_offsets = tuple(row_offsets)
        self.col_offsets = tuple(col_offsets)

        # Pre-padded fused table, built ONCE (no per-call padding / casting).
        # Rows padded to 256 (one-hot contraction dim; 256-aligned for the
        # v6e/v7x 2x256x256 MXU, also a multiple of v5e's 128), lanes to 128.
        v_tot_p = _round_up(max(row, 1), 256)
        d_tot_p = _round_up(max(col, 1), 128)
        fused = jnp.zeros((v_tot_p, d_tot_p), jnp.float32)
        for tab, r0, c0 in zip(sub_tables, row_offsets, col_offsets):
            fused = fused.at[r0:r0 + tab.shape[0], c0:c0 + tab.shape[1]].set(tab)
        self.fused_table = fused

        self._forward = _make_fused_forward(
            cards=tuple(self.cardinalities.values()),
            dims=tuple(self.dims),
            row_offsets=self.row_offsets,
            col_offsets=self.col_offsets,
            v_tot_p=v_tot_p,
            d_tot_p=d_tot_p,
        )

    def __bool__(self):
        return bool(self.tables)

    @staticmethod
    def id(sub_column: str) -> str:
        return f"embedder@{sub_column}"

    def get(self, sub_column: str) -> jax.Array:
        return self.tables[self.id(sub_column)]

    def __call__(self, x: dict) -> dict:
        # TODO(synk): torch nested-tensor padding (is_nested branch) has no
        # JAX/Pallas equivalent here; inputs are assumed already dense.
        xs = [jnp.asarray(x[sub_col]) for sub_col in self.cardinalities]
        shapes = {tuple(v.shape) for v in xs}
        if len(shapes) != 1:
            raise ValueError(f"All sub-column inputs must share one shape, got {shapes}")
        outs = self._forward(self.fused_table, *xs)
        return {sub_col: out for sub_col, out in zip(self.cardinalities, outs)}

    def zero_mask(self, *first_dims: int) -> dict:
        return {
            sub_col: jnp.zeros(first_dims + (self.dims[i],), dtype=jnp.float32)
            for i, sub_col in enumerate(self.cardinalities)
        }


# ----------------------------------------------------------------------------
# Demo / correctness check
# ----------------------------------------------------------------------------
if __name__ == "__main__":
    batch, seq = 2, 8
    cardinalities = {"col_a": 7, "col_b": 23, "col_c": 101}

    embedders = Embedders(ModelSize.M, cardinalities, seed=0)

    key = jax.random.PRNGKey(0)
    x = {}
    for sub_col, card in cardinalities.items():
        key, sub = jax.random.split(key)
        # same shape convention as the torch forward: (batch, seq, 1) integer codes
        x[sub_col] = jax.random.randint(sub, (batch, seq, 1), 0, card, dtype=jnp.int32)

    out = embedders(x)
    out = jax.tree_util.tree_map(jax.block_until_ready, out)

    # Reference check against plain-JAX gather (semantics of nn.Embedding + squeeze(-2))
    ok = True
    for sub_col in cardinalities:
        table = embedders.get(sub_col)
        ref = jnp.squeeze(jnp.take(table, x[sub_col], axis=0), axis=-2)
        got = out[sub_col]
        ok &= got.shape == (batch, seq, table.shape[1])
        ok &= bool(jnp.allclose(got, ref, atol=1e-5, rtol=1e-5))

    if ok:
        print("KERNEL_OK")
    else:
        print("KERNEL_MISMATCH")
</pallas_src>

<mosaic_0001>
module attributes {stable_mosaic.version = 11 : i64} {
  func.func @_fused_onehot_kernel(%arg0: i32, %arg1: memref<16x3xi32, #tpu.memory_space<vmem>>, %arg2: memref<256x128xf32, #tpu.memory_space<vmem>>, %arg3: memref<16x128xf32, #tpu.memory_space<vmem>>) attributes {dimension_semantics = [#tpu.dimension_semantics<arbitrary>], iteration_bounds = array<i64: 1>, scalar_prefetch = 0 : i64, scratch_operands = 0 : i64, tpu.core_type = #tpu.core_type<tc>, window_params = [{transform_indices = @transform_0, window_bounds = array<i64: 16, 3>}, {pipeline_mode = #tpu.pipeline_mode<synchronous>, transform_indices = @transform_1, window_bounds = array<i64: 256, 128>}, {transform_indices = @transform_2, window_bounds = array<i64: 16, 128>}]} {
    %c0 = arith.constant 0 : index
    %c0_0 = arith.constant 0 : index
    %0 = vector.load %arg1[%c0, %c0_0] : memref<16x3xi32, #tpu.memory_space<vmem>>, vector<16x3xi32>
    %1 = tpu.iota {dimensions = array<i32: 1>} : vector<16x256xi32>
    %2 = vector.extract_strided_slice %0 {offsets = [0, 0], sizes = [16, 1], strides = [1, 1]} : vector<16x3xi32> to vector<16x1xi32>
    %3 = vector.broadcast %2 : vector<16x1xi32> to vector<16x256xi32>
    %4 = arith.cmpi eq, %1, %3 : vector<16x256xi32>
    %5 = arith.extui %4 : vector<16x256xi1> to vector<16x256xi32>
    %6 = arith.sitofp %5 : vector<16x256xi32> to vector<16x256xf32>
    %7 = vector.extract_strided_slice %0 {offsets = [0, 1], sizes = [16, 1], strides = [1, 1]} : vector<16x3xi32> to vector<16x1xi32>
    %8 = vector.broadcast %7 : vector<16x1xi32> to vector<16x256xi32>
    %9 = arith.cmpi eq, %1, %8 : vector<16x256xi32>
    %10 = arith.extui %9 : vector<16x256xi1> to vector<16x256xi32>
    %11 = arith.sitofp %10 : vector<16x256xi32> to vector<16x256xf32>
    %12 = arith.addf %6, %11 : vector<16x256xf32>
    %13 = vector.extract_strided_slice %0 {offsets = [0, 2], sizes = [16, 1], strides = [1, 1]} : vector<16x3xi32> to vector<16x1xi32>
    %14 = vector.broadcast %13 : vector<16x1xi32> to vector<16x256xi32>
    %15 = arith.cmpi eq, %1, %14 : vector<16x256xi32>
    %16 = arith.extui %15 : vector<16x256xi1> to vector<16x256xi32>
    %17 = arith.sitofp %16 : vector<16x256xi32> to vector<16x256xf32>
    %18 = arith.addf %12, %17 : vector<16x256xf32>
    %c0_1 = arith.constant 0 : index
    %c0_2 = arith.constant 0 : index
    %19 = vector.load %arg2[%c0_1, %c0_2] : memref<256x128xf32, #tpu.memory_space<vmem>>, vector<256x128xf32>
    %cst = arith.constant dense<0.000000e+00> : vector<16x128xf32>
    %20 = tpu.matmul %18, %19, %cst {dimension_numbers = #tpu.dot_dimension_numbers<[1], [0], [0], [1], [0, 0, 1, 1], [], []>} : vector<16x256xf32>, vector<256x128xf32>, vector<16x128xf32> -> vector<16x128xf32>
    %c0_3 = arith.constant 0 : index
    %c0_4 = arith.constant 0 : index
    %21 = vector.load %arg3[%c0_3, %c0_4] : memref<16x128xf32, #tpu.memory_space<vmem>>, vector<16x128xf32>
    tpu.vector_store %arg3[%c0_3, %c0_4], %20 {strides = array<i32>} : memref<16x128xf32, #tpu.memory_space<vmem>>, vector<16x128xf32>,
    return
  }
  func.func @transform_0(%arg0: i32) -> (i32, i32) {
    %c0_i32 = arith.constant 0 : i32
    %c0_i32_0 = arith.constant 0 : i32
    return %arg0, %c0_i32 : i32, i32
  }
  func.func @transform_1(%arg0: i32) -> (i32, i32) {
    %c0_i32 = arith.constant 0 : i32
    %c0_i32_0 = arith.constant 0 : i32
    %c0_i32_1 = arith.constant 0 : i32
    return %c0_i32, %c0_i32_0 : i32, i32
  }
  func.func @transform_2(%arg0: i32) -> (i32, i32) {
    %c0_i32 = arith.constant 0 : i32
    %c0_i32_0 = arith.constant 0 : i32
    return %arg0, %c0_i32 : i32, i32
  }
}

</mosaic_0001>

<llo_original>
// kernel: fwd.1
$region0: #{fwd.1}
  #allocation0 [shape = 'u32[]', space=smem, size = 0x4, offset = 0x4, fixed_abs, tag = 'smem constant byte address 0x4 - core index']
  #allocation1 [shape = 'u32[144,128]{1,0:T(1,128)}', space=vmem, size = 0x12000, scoped, tag = 'internal scratch']
  %s0 = inlined_call_operand.vmem [shape: s32[16,3], index: 0, kind: input, shape index: {}]
  %s1 = inlined_call_operand.hbm [shape: f32[256,128], index: 1, kind: input, shape index: {}]
  %s2 = inlined_call_operand.vmem [shape: f32[16,128], index: 2, kind: output, shape index: {}]
  %s3 = sld [smem:[#allocation0]]
  $region22: #{fwd.1} parent=0
    _
  %s5 = ssub.s32 1, %s3
  %s6 = scalar_select 0, %s5, %s3
  $region1: #{fwd.1} parent=0
    #allocation2 [shape = 'u8[131072]{0}', space=vmem, size = 0x20000, scoped, tag = 'input window, operand 1, single buffered']
    #allocation3 [shape = 's32[1]{0}', space=sflag, size = 0x4, scoped, tag = 'scoped memory for fwd.1']
    %7 = vsyncpa [#allocation3], 0
    // Predicated region
    $region2: #{fwd.1} parent=1 // pred_check
      _
    $region3: #{fwd.1} parent=1 // pred_check_branch
      %9 = sbr.rel (0) target = $region5
    $region4: #{fwd.1} parent=1 // pred_region
      _
    $region5: #{fwd.1} parent=1 // pred_fallthru
      _
    // Predicated region
    $region6: #{fwd.1} parent=1 // pred_check
      _
    $region7: #{fwd.1} parent=1 // pred_check_branch
      %11 = sbr.rel (0) target = $region9
    $region8: #{fwd.1} parent=1 // pred_region
      %s13 = ssub.s32 4096, 4096
      %14 = vsyncadd [#allocation3], %s13
      %s15 = sshll.u32 [#allocation2], 4
      %s16 = int_to_ptr.vmem [resolvable:$true] %s15
      %21 = dma.hbm_to_vmem [thread:$0]  %s1, 4096, %s16, [#allocation3], 128, 128, 8
    $region9: #{fwd.1} parent=1 // pred_fallthru
      _
    // Predicated region
    $region10: #{fwd.1} parent=1 // pred_check
      _
    $region11: #{fwd.1} parent=1 // pred_check_branch
      %23 = sbr.rel (0) target = $region13
    $region12: #{fwd.1} parent=1 // pred_region
      %24 = dma.done [#allocation3], 4096
    $region13: #{fwd.1} parent=1 // pred_fallthru
      _
    %v25 = vld [vmem:[%s0] sm:$0xff]
    %v26 = vld [vmem:[%s0 + $0x8] sm:$0xff]
    %v27 = vlaneseq
    %v28 = vand.u32 %v27, 127
    %v29 = vadd.s32 %v28, 128
    %30 = vset.pattern.permute.xlu0 0
    %31 = vperm.xlu0 %30, %v25
    %v32 = vpop.permute.xlu0 %31
    %33 = vset.pattern.permute.xlu0 0
    %34 = vperm.xlu0 %33, %v26
    %v35 = vpop.permute.xlu0 %34
    %vm36 = vcmp.eq.s32.totalorder %v28, %v32
    %vm37 = vcmp.eq.s32.totalorder %v29, %v32
    %vm38 = vcmp.eq.s32.totalorder %v28, %v35
    %vm39 = vcmp.eq.s32.totalorder %v29, %v35
    %v40 = vsel %vm36, 1, 0
    %v41 = vsel %vm37, 1, 0
    %v42 = vsel %vm38, 1, 0
    %v43 = vsel %vm39, 1, 0
    %v44 = vcvt.s32.f32 %v40
    %v45 = vcvt.s32.f32 %v41
    %v46 = vcvt.s32.f32 %v42
    %v47 = vcvt.s32.f32 %v43
    %48 = vset.pattern.permute.xlu0 1
    %49 = vperm.xlu0 %48, %v25
    %v50 = vpop.permute.xlu0 %49
    %51 = vset.pattern.permute.xlu0 1
    %52 = vperm.xlu0 %51, %v26
    %v53 = vpop.permute.xlu0 %52
    %vm54 = vcmp.eq.s32.totalorder %v28, %v50
    %vm55 = vcmp.eq.s32.totalorder %v29, %v50
    %vm56 = vcmp.eq.s32.totalorder %v28, %v53
    %vm57 = vcmp.eq.s32.totalorder %v29, %v53
    %v58 = vsel %vm54, 1, 0
    %v59 = vsel %vm55, 1, 0
    %v60 = vsel %vm56, 1, 0
    %v61 = vsel %vm57, 1, 0
    %v62 = vcvt.s32.f32 %v58
    %v63 = vcvt.s32.f32 %v59
    %v64 = vcvt.s32.f32 %v60
    %v65 = vcvt.s32.f32 %v61
    %v66 = vadd.f32 %v44, %v62
    %v67 = vadd.f32 %v45, %v63
    %v68 = vadd.f32 %v46, %v64
    %v69 = vadd.f32 %v47, %v65
    %70 = vset.pattern.permute.xlu0 2
    %71 = vperm.xlu0 %70, %v25
    %v72 = vpop.permute.xlu0 %71
    %73 = vset.pattern.permute.xlu0 2
    %74 = vperm.xlu0 %73, %v26
    %v75 = vpop.permute.xlu0 %74
    %vm76 = vcmp.eq.s32.totalorder %v28, %v72
    %vm77 = vcmp.eq.s32.totalorder %v29, %v72
    %vm78 = vcmp.eq.s32.totalorder %v28, %v75
    %vm79 = vcmp.eq.s32.totalorder %v29, %v75
    %v80 = vsel %vm76, 1, 0
    %v81 = vsel %vm77, 1, 0
    %v82 = vsel %vm78, 1, 0
    %v83 = vsel %vm79, 1, 0
    %v84 = vcvt.s32.f32 %v80
    %v85 = vcvt.s32.f32 %v81
    %v86 = vcvt.s32.f32 %v82
    %v87 = vcvt.s32.f32 %v83
    %v88 = vadd.f32 %v66, %v84
    %v89 = vadd.f32 %v67, %v85
    %v90 = vadd.f32 %v68, %v86
    %v91 = vadd.f32 %v69, %v87
    %v92 = vld [vmem:[#allocation2] sm:$0xff]
    %v93 = vld [vmem:[#allocation2 + $0x8] sm:$0xff]
    %v94 = vld [vmem:[#allocation2 + $0x10] sm:$0xff]
    %v95 = vld [vmem:[#allocation2 + $0x18] sm:$0xff]
    %v96 = vld [vmem:[#allocation2 + $0x20] sm:$0xff]
    %v97 = vld [vmem:[#allocation2 + $0x28] sm:$0xff]
    %v98 = vld [vmem:[#allocation2 + $0x30] sm:$0xff]
    %v99 = vld [vmem:[#allocation2 + $0x38] sm:$0xff]
    %v100 = vld [vmem:[#allocation2 + $0x40] sm:$0xff]
    %v101 = vld [vmem:[#allocation2 + $0x48] sm:$0xff]
    %v102 = vld [vmem:[#allocation2 + $0x50] sm:$0xff]
    %v103 = vld [vmem:[#allocation2 + $0x58] sm:$0xff]
    %v104 = vld [vmem:[#allocation2 + $0x60] sm:$0xff]
    %v105 = vld [vmem:[#allocation2 + $0x68] sm:$0xff]
    %v106 = vld [vmem:[#allocation2 + $0x70] sm:$0xff]
    %v107 = vld [vmem:[#allocation2 + $0x78] sm:$0xff]
    %v108 = vld [vmem:[#allocation2 + $0x80] sm:$0xff]
    %v109 = vld [vmem:[#allocation2 + $0x88] sm:$0xff]
    %v110 = vld [vmem:[#allocation2 + $0x90] sm:$0xff]
    %v111 = vld [vmem:[#allocation2 + $0x98] sm:$0xff]
    %v112 = vld [vmem:[#allocation2 + $0xa0] sm:$0xff]
    %v113 = vld [vmem:[#allocation2 + $0xa8] sm:$0xff]
    %v114 = vld [vmem:[#allocation2 + $0xb0] sm:$0xff]
    %v115 = vld [vmem:[#allocation2 + $0xb8] sm:$0xff]
    %v116 = vld [vmem:[#allocation2 + $0xc0] sm:$0xff]
    %v117 = vld [vmem:[#allocation2 + $0xc8] sm:$0xff]
    %v118 = vld [vmem:[#allocation2 + $0xd0] sm:$0xff]
    %v119 = vld [vmem:[#allocation2 + $0xd8] sm:$0xff]
    %v120 = vld [vmem:[#allocation2 + $0xe0] sm:$0xff]
    %v121 = vld [vmem:[#allocation2 + $0xe8] sm:$0xff]
    %v122 = vld [vmem:[#allocation2 + $0xf0] sm:$0xff]
    %v123 = vld [vmem:[#allocation2 + $0xf8] sm:$0xff]
    %124 = vmatprep.subr.mxu0 0.0
    %125 = vmatpush1.msra.mxu0 %v107
    %126 = vmatprep.subr.mxu0 0.0
    %127 = vmatpush1.msra.mxu0 %v106
    %128 = vmatprep.subr.mxu0 0.0
    %129 = vmatpush1.msra.mxu0 %v105
    %130 = vmatprep.subr.mxu0 0.0
    %131 = vmatpush1.msra.mxu0 %v104
    %132 = vmatprep.subr.mxu0 0.0
    %133 = vmatpush1.msra.mxu0 %v103
    %134 = vmatprep.subr.mxu0 0.0
    %135 = vmatpush1.msra.mxu0 %v102
    %136 = vmatprep.subr.mxu0 0.0
    %137 = vmatpush1.msra.mxu0 %v101
    %138 = vmatprep.subr.mxu0 0.0
    %139 = vmatpush1.msra.mxu0 %v100
    %140 = vmatprep.subr.mxu0 0.0
    %141 = vmatpush1.msra.mxu0 %v99
    %142 = vmatprep.subr.mxu0 0.0
    %143 = vmatpush1.msra.mxu0 %v98
    %144 = vmatprep.subr.mxu0 0.0
    %145 = vmatpush1.msra.mxu0 %v97
    %146 = vmatprep.subr.mxu0 0.0
    %147 = vmatpush1.msra.mxu0 %v96
    %148 = vmatprep.subr.mxu0 0.0
    %149 = vmatpush1.msra.mxu0 %v95
    %150 = vmatprep.subr.mxu0 0.0
    %151 = vmatpush1.msra.mxu0 %v94
    %152 = vmatprep.subr.mxu0 0.0
    %153 = vmatpush1.msra.mxu0 %v93
    %154 = vmatprep.subr.mxu0 0.0
    %155 = vmatpush1.msra.mxu0 %v92
    %156 = vmatprep.subr.mxu0 0.0
    %157 = vmatpush2.msra.mxu0 %v123
    %158 = vmatprep.subr.mxu0 0.0
    %159 = vmatpush2.msra.mxu0 %v122
    %160 = vmatprep.subr.mxu0 0.0
    %161 = vmatpush2.msra.mxu0 %v121
    %162 = vmatprep.subr.mxu0 0.0
    %163 = vmatpush2.msra.mxu0 %v120
    %164 = vmatprep.subr.mxu0 0.0
    %165 = vmatpush2.msra.mxu0 %v119
    %166 = vmatprep.subr.mxu0 0.0
    %167 = vmatpush2.msra.mxu0 %v118
    %168 = vmatprep.subr.mxu0 0.0
    %169 = vmatpush2.msra.mxu0 %v117
    %170 = vmatprep.subr.mxu0 0.0
    %171 = vmatpush2.msra.mxu0 %v116
    %172 = vmatprep.subr.mxu0 0.0
    %173 = vmatpush2.msra.mxu0 %v115
    %174 = vmatprep.subr.mxu0 0.0
    %175 = vmatpush2.msra.mxu0 %v114
    %176 = vmatprep.subr.mxu0 0.0
    %177 = vmatpush2.msra.mxu0 %v113
    %178 = vmatprep.subr.mxu0 0.0
    %179 = vmatpush2.msra.mxu0 %v112
    %180 = vmatprep.subr.mxu0 0.0
    %181 = vmatpush2.msra.mxu0 %v111
    %182 = vmatprep.subr.mxu0 0.0
    %183 = vmatpush2.msra.mxu0 %v110
    %184 = vmatprep.subr.mxu0 0.0
    %185 = vmatpush2.msra.mxu0 %v109
    %186 = vmatprep.subr.mxu0 0.0
    %187 = vmatpush2.msra.mxu0 %v108
    %188 = vmatprep.mubr.f32.mxu0 %v89
    %189 = vmatmul.mubr.f32.gmra.mxu0 %v88
    %v190 = vpop.f32.mrf.mxu0
    %v191 = vadd.f32 0.0, %v190
    %v192 = vpop.f32.mrf.mxu0
    %193 = vmatprep.mubr.f32.mxu0 %v91
    %194 = vmatmul.mubr.f32.gmra.mxu0 %v90
    %v195 = vpop.f32.mrf.mxu0
    %v196 = vadd.f32 0.0, %v195
    %v197 = vpop.f32.mrf.mxu0
    %198 = vdwg.mxu0
    %199 = vst [vmem:[%s2] sm:$0xff] %v191
    %200 = vst [vmem:[%s2 + $0x8] sm:$0xff] %v196
    // Predicated region
    $region14: #{fwd.1} parent=1 // pred_check
      _
    $region15: #{fwd.1} parent=1 // pred_check_branch
      %202 = sbr.rel (0) target = $region17
    $region16: #{fwd.1} parent=1 // pred_region
      _
    $region17: #{fwd.1} parent=1 // pred_fallthru
      _
    // Predicated region
    $region18: #{fwd.1} parent=1 // pred_check
      _
    $region19: #{fwd.1} parent=1 // pred_check_branch
      %204 = sbr.rel (0) target = $region21
    $region20: #{fwd.1} parent=1 // pred_region
      _
    $region21: #{fwd.1} parent=1 // pred_fallthru
      _
    %205 = vsyncpa [#allocation3], 1

</llo_original>
